<compile_context>
chip_gen: v7x
topology: tpu7x:2x2x1
jax: 0.10.0
libtpu: 0.0.40
codegen_flags: <defaults>
</compile_context>

<pallas_src>
import functools

import jax
import jax.numpy as jnp
from jax.experimental import pallas as pl
from jax.experimental.pallas import tpu as pltpu


def _fused_attn_kernel(h_ref, wqkv_ref, bqkv_ref, wo_ref, bo_ref, out_ref,
                       *, G, D):
    """One (batch, head-group) pair per grid step.

    h_ref    : (T, E)        bf16 hidden states for this batch element
    wqkv_ref : (E, 3*G*D)    bf16  [Wq_group | Wk_group | Wv_group], q pre-scaled
    bqkv_ref : (1, 3*G*D)    f32   matching biases (q pre-scaled)
    wo_ref   : (G*D, E)      bf16  this group's slice of out_proj weight
    bo_ref   : (1, E)        f32   out_proj bias (added once, at group 0)
    out_ref  : (T, E)        f32   output block, resident across the group axis
    """
    GD = G * D

    # Single lane-dense projection: bf16 MXU operands, f32 accumulation.
    qkv = jnp.dot(h_ref[...], wqkv_ref[...],
                  preferred_element_type=jnp.float32) + bqkv_ref[...]  # (T, 3GD)

    # Per-head attention (static unroll over the G heads of this group).
    ctx_heads = []
    for i in range(G):
        q = qkv[:, i * D:(i + 1) * D]                       # (T, D) f32
        k = qkv[:, GD + i * D:GD + (i + 1) * D]
        v = qkv[:, 2 * GD + i * D:2 * GD + (i + 1) * D]

        # scores = q @ k^T (contract head_dim), f32 accumulation on the MXU.
        s = jax.lax.dot_general(
            q.astype(jnp.bfloat16), k.astype(jnp.bfloat16),
            (((1,), (1,)), ((), ())),
            preferred_element_type=jnp.float32)             # (T, T)

        # Numerically stable softmax, all f32 (VPU + EUP approx reciprocal).
        s = s - jnp.max(s, axis=-1, keepdims=True)
        p = jnp.exp(s)
        p = p * pl.reciprocal(jnp.sum(p, axis=-1, keepdims=True), approx=True)

        ctx_heads.append(
            jnp.dot(p.astype(jnp.bfloat16), v.astype(jnp.bfloat16),
                    preferred_element_type=jnp.float32))    # (T, D) f32

    ctx_group = (ctx_heads[0] if G == 1
                 else jnp.concatenate(ctx_heads, axis=-1))  # (T, GD) f32
    partial = jnp.dot(ctx_group.astype(jnp.bfloat16), wo_ref[...],
                      preferred_element_type=jnp.float32)   # (T, E) f32

    g = pl.program_id(1)

    @pl.when(g == 0)
    def _():
        out_ref[...] = (partial + bo_ref[...]).astype(out_ref.dtype)

    @pl.when(g > 0)
    def _():
        out_ref[...] = (out_ref[...] + partial).astype(out_ref.dtype)


def _pick_group_size(num_heads, head_dim):
    """Largest divisor of num_heads with group_size*head_dim close to >=128."""
    target = max(1, 128 // max(head_dim, 1))
    g = min(num_heads, target)
    while num_heads % g != 0:
        g -= 1
    return max(g, 1)


def _vmem_limit_bytes():
    """Generation-aware VMEM limit with ~25% headroom."""
    try:
        cap = pltpu.get_tpu_info().vmem_capacity_bytes
    except Exception:
        return 48 * 1024 * 1024          # conservative (safe on v7x too)
    return max(32 * 1024 * 1024, (int(cap) * 3) // 4)


def bart_attention(hidden_states, params, *, num_heads):
    """hidden_states: (B, T, E) float32.  params: BART linear params in
    PyTorch convention (weight shape (out, in), bias shape (out,))."""
    B, T, E = hidden_states.shape
    H = num_heads
    D = E // H
    assert D * H == E
    scaling = D ** (-0.5)

    G = _pick_group_size(H, D)           # heads per grid step
    NG = H // G                          # number of head groups
    GD = G * D

    bf16, f32 = jnp.bfloat16, jnp.float32

    # --- wrapper-side weight prep (one-time glue, zero kernel cost) --------
    # PyTorch Linear: y = x @ W.T + b, with W of shape (out, in).
    wq_t = params["q_proj_w"].T * scaling          # (E, E), scaling folded in
    wk_t = params["k_proj_w"].T
    wv_t = params["v_proj_w"].T
    wo_t = params["out_proj_w"].T                  # (E_in, E_out)

    def group_cols(w):                             # (E, E) -> (E, NG, GD)
        return w.reshape(E, NG, GD)

    wqkv = jnp.concatenate(
        [group_cols(wq_t), group_cols(wk_t), group_cols(wv_t)],
        axis=-1).transpose(1, 0, 2).astype(bf16)   # (NG, E, 3*GD)

    bqkv = jnp.concatenate(
        [(params["q_proj_b"] * scaling).reshape(NG, 1, GD),
         params["k_proj_b"].reshape(NG, 1, GD),
         params["v_proj_b"].reshape(NG, 1, GD)],
        axis=-1).astype(f32)                       # (NG, 1, 3*GD)

    wo = wo_t.reshape(NG, GD, E).astype(bf16)      # (NG, GD, E)
    bo = params["out_proj_b"].reshape(1, E).astype(f32)

    h_bf16 = hidden_states.astype(bf16)            # half the DMA bytes

    kernel = functools.partial(_fused_attn_kernel, G=G, D=D)
    vmem_limit = _vmem_limit_bytes()

    out = pl.pallas_call(
        kernel,
        out_shape=jax.ShapeDtypeStruct((B, T, E), hidden_states.dtype),
        grid_spec=pltpu.PrefetchScalarGridSpec(
            num_scalar_prefetch=0,
            grid=(B, NG),                               # group axis innermost
            in_specs=[
                pl.BlockSpec((None, T, E), lambda b, g: (b, 0, 0)),     # hidden
                pl.BlockSpec((None, E, 3 * GD), lambda b, g: (g, 0, 0)),  # wqkv
                pl.BlockSpec((None, 1, 3 * GD), lambda b, g: (g, 0, 0)),  # bqkv
                pl.BlockSpec((None, GD, E), lambda b, g: (g, 0, 0)),      # wo
                pl.BlockSpec((1, E), lambda b, g: (0, 0)),                # bo
            ],
            out_specs=pl.BlockSpec((None, T, E), lambda b, g: (b, 0, 0)),
        ),
        compiler_params=pltpu.CompilerParams(
            dimension_semantics=("parallel", "arbitrary"),
            vmem_limit_bytes=vmem_limit),
    )(h_bf16, wqkv, bqkv, wo, bo)

    return out


def _reference(hidden_states, params, *, num_heads):
    """Pure-JAX f32 reference mirroring BartAttention.forward (defaults)."""
    B, T, E = hidden_states.shape
    D = E // num_heads
    scaling = D ** (-0.5)

    def lin(x, w, b):
        return x @ w.T + b

    q = lin(hidden_states, params["q_proj_w"], params["q_proj_b"]) * scaling
    k = lin(hidden_states, params["k_proj_w"], params["k_proj_b"])
    v = lin(hidden_states, params["v_proj_w"], params["v_proj_b"])

    def shape(x):  # (B, T, E) -> (B*H, T, D)
        return x.reshape(B, T, num_heads, D).transpose(0, 2, 1, 3).reshape(
            B * num_heads, T, D)

    q, k, v = shape(q), shape(k), shape(v)
    attn = jnp.einsum("btd,bsd->bts", q, k)
    attn = jax.nn.softmax(attn, axis=-1)
    out = jnp.einsum("bts,bsd->btd", attn, v)
    out = out.reshape(B, num_heads, T, D).transpose(0, 2, 1, 3).reshape(B, T, E)
    return lin(out, params["out_proj_w"], params["out_proj_b"])


if __name__ == "__main__":
    B, T, E, H = 2, 8, 32, 4

    key = jax.random.PRNGKey(0)
    keys = jax.random.split(key, 9)
    scale = 0.02
    params = {
        "q_proj_w":   scale * jax.random.normal(keys[0], (E, E), jnp.float32),
        "q_proj_b":   scale * jax.random.normal(keys[1], (E,), jnp.float32),
        "k_proj_w":   scale * jax.random.normal(keys[2], (E, E), jnp.float32),
        "k_proj_b":   scale * jax.random.normal(keys[3], (E,), jnp.float32),
        "v_proj_w":   scale * jax.random.normal(keys[4], (E, E), jnp.float32),
        "v_proj_b":   scale * jax.random.normal(keys[5], (E,), jnp.float32),
        "out_proj_w": scale * jax.random.normal(keys[6], (E, E), jnp.float32),
        "out_proj_b": scale * jax.random.normal(keys[7], (E,), jnp.float32),
    }
    hidden = jax.random.normal(keys[8], (B, T, E), jnp.float32)

    out = bart_attention(hidden, params, num_heads=H)
    out = jax.block_until_ready(out)

    ref = _reference(hidden, params, num_heads=H)
    assert out.shape == (B, T, E)
    # bf16 MXU operands (f32 accumulation) + approx reciprocal -> loose tol.
    assert jnp.allclose(out, ref, atol=1e-2, rtol=1e-2), (
        f"max abs diff {jnp.max(jnp.abs(out - ref))}")

    print("KERNEL_OK")
</pallas_src>

<mosaic_0001>
module attributes {stable_mosaic.version = 11 : i64} {
  func.func @_fused_attn_kernel(%arg0: i32, %arg1: i32, %arg2: memref<1x8x32xbf16, #tpu.memory_space<vmem>>, %arg3: memref<1x32x96xbf16, #tpu.memory_space<vmem>>, %arg4: memref<1x1x96xf32, #tpu.memory_space<vmem>>, %arg5: memref<1x32x32xbf16, #tpu.memory_space<vmem>>, %arg6: memref<1x32xf32, #tpu.memory_space<vmem>>, %arg7: memref<1x8x32xf32, #tpu.memory_space<vmem>>) attributes {dimension_semantics = [#tpu.dimension_semantics<parallel>, #tpu.dimension_semantics<arbitrary>], iteration_bounds = array<i64: 2, 1>, scalar_prefetch = 0 : i64, scratch_operands = 0 : i64, tpu.core_type = #tpu.core_type<tc>, window_params = [{transform_indices = @transform_0, window_bounds = array<i64: 1, 8, 32>}, {transform_indices = @transform_1, window_bounds = array<i64: 1, 32, 96>}, {transform_indices = @transform_2, window_bounds = array<i64: 1, 1, 96>}, {transform_indices = @transform_3, window_bounds = array<i64: 1, 32, 32>}, {pipeline_mode = #tpu.pipeline_mode<synchronous>, transform_indices = @transform_4, window_bounds = array<i64: 1, 32>}, {transform_indices = @transform_5, window_bounds = array<i64: 1, 8, 32>}]} {
    %c0 = arith.constant 0 : index
    %c0_0 = arith.constant 0 : index
    %c0_1 = arith.constant 0 : index
    %0 = vector.load %arg2[%c0, %c0_0, %c0_1] : memref<1x8x32xbf16, #tpu.memory_space<vmem>>, vector<1x8x32xbf16>
    %1 = vector.shape_cast %0 : vector<1x8x32xbf16> to vector<8x32xbf16>
    %c0_2 = arith.constant 0 : index
    %c0_3 = arith.constant 0 : index
    %c0_4 = arith.constant 0 : index
    %2 = vector.load %arg3[%c0_2, %c0_3, %c0_4] : memref<1x32x96xbf16, #tpu.memory_space<vmem>>, vector<1x32x96xbf16>
    %3 = vector.shape_cast %2 : vector<1x32x96xbf16> to vector<32x96xbf16>
    %cst = arith.constant dense<0.000000e+00> : vector<8x96xf32>
    %4 = tpu.matmul %1, %3, %cst {dimension_numbers = #tpu.dot_dimension_numbers<[1], [0], [0], [1], [0, 0, 1, 1], [], []>} : vector<8x32xbf16>, vector<32x96xbf16>, vector<8x96xf32> -> vector<8x96xf32>
    %c0_5 = arith.constant 0 : index
    %c0_6 = arith.constant 0 : index
    %c0_7 = arith.constant 0 : index
    %5 = vector.load %arg4[%c0_5, %c0_6, %c0_7] : memref<1x1x96xf32, #tpu.memory_space<vmem>>, vector<1x1x96xf32>
    %6 = vector.shape_cast %5 : vector<1x1x96xf32> to vector<1x96xf32>
    %7 = vector.broadcast %6 : vector<1x96xf32> to vector<8x96xf32>
    %8 = arith.addf %4, %7 : vector<8x96xf32>
    %9 = vector.extract_strided_slice %8 {offsets = [0, 0], sizes = [8, 8], strides = [1, 1]} : vector<8x96xf32> to vector<8x8xf32>
    %10 = vector.extract_strided_slice %8 {offsets = [0, 32], sizes = [8, 8], strides = [1, 1]} : vector<8x96xf32> to vector<8x8xf32>
    %11 = vector.extract_strided_slice %8 {offsets = [0, 64], sizes = [8, 8], strides = [1, 1]} : vector<8x96xf32> to vector<8x8xf32>
    %12 = arith.truncf %9 : vector<8x8xf32> to vector<8x8xbf16>
    %13 = arith.truncf %10 : vector<8x8xf32> to vector<8x8xbf16>
    %cst_8 = arith.constant dense<0.000000e+00> : vector<8x8xf32>
    %14 = tpu.matmul %12, %13, %cst_8 {dimension_numbers = #tpu.dot_dimension_numbers<[1], [1], [0], [0], [0, 0, 1, 0], [], []>} : vector<8x8xbf16>, vector<8x8xbf16>, vector<8x8xf32> -> vector<8x8xf32>
    %cst_9 = arith.constant dense<0xFF800000> : vector<8xf32>
    %15 = vector.multi_reduction <maximumf>, %14, %cst_9 [1] : vector<8x8xf32> to vector<8xf32>
    %16 = vector.shape_cast %15 : vector<8xf32> to vector<8x1xf32>
    %17 = vector.broadcast %16 : vector<8x1xf32> to vector<8x8xf32>
    %18 = arith.subf %14, %17 : vector<8x8xf32>
    %19 = math.exp %18 : vector<8x8xf32>
    %cst_10 = arith.constant dense<0.000000e+00> : vector<8xf32>
    %20 = vector.multi_reduction <add>, %19, %cst_10 [1] : vector<8x8xf32> to vector<8xf32>
    %21 = vector.shape_cast %20 : vector<8xf32> to vector<8x1xf32>
    %22 = tpu.reciprocal %21 {approx = true} : vector<8x1xf32> -> vector<8x1xf32>
    %23 = vector.broadcast %22 : vector<8x1xf32> to vector<8x8xf32>
    %24 = arith.mulf %19, %23 : vector<8x8xf32>
    %25 = arith.truncf %24 : vector<8x8xf32> to vector<8x8xbf16>
    %26 = arith.truncf %11 : vector<8x8xf32> to vector<8x8xbf16>
    %cst_11 = arith.constant dense<0.000000e+00> : vector<8x8xf32>
    %27 = tpu.matmul %25, %26, %cst_11 {dimension_numbers = #tpu.dot_dimension_numbers<[1], [0], [0], [1], [0, 0, 1, 1], [], []>} : vector<8x8xbf16>, vector<8x8xbf16>, vector<8x8xf32> -> vector<8x8xf32>
    %28 = vector.extract_strided_slice %8 {offsets = [0, 8], sizes = [8, 8], strides = [1, 1]} : vector<8x96xf32> to vector<8x8xf32>
    %29 = vector.extract_strided_slice %8 {offsets = [0, 40], sizes = [8, 8], strides = [1, 1]} : vector<8x96xf32> to vector<8x8xf32>
    %30 = vector.extract_strided_slice %8 {offsets = [0, 72], sizes = [8, 8], strides = [1, 1]} : vector<8x96xf32> to vector<8x8xf32>
    %31 = arith.truncf %28 : vector<8x8xf32> to vector<8x8xbf16>
    %32 = arith.truncf %29 : vector<8x8xf32> to vector<8x8xbf16>
    %cst_12 = arith.constant dense<0.000000e+00> : vector<8x8xf32>
    %33 = tpu.matmul %31, %32, %cst_12 {dimension_numbers = #tpu.dot_dimension_numbers<[1], [1], [0], [0], [0, 0, 1, 0], [], []>} : vector<8x8xbf16>, vector<8x8xbf16>, vector<8x8xf32> -> vector<8x8xf32>
    %cst_13 = arith.constant dense<0xFF800000> : vector<8xf32>
    %34 = vector.multi_reduction <maximumf>, %33, %cst_13 [1] : vector<8x8xf32> to vector<8xf32>
    %35 = vector.shape_cast %34 : vector<8xf32> to vector<8x1xf32>
    %36 = vector.broadcast %35 : vector<8x1xf32> to vector<8x8xf32>
    %37 = arith.subf %33, %36 : vector<8x8xf32>
    %38 = math.exp %37 : vector<8x8xf32>
    %cst_14 = arith.constant dense<0.000000e+00> : vector<8xf32>
    %39 = vector.multi_reduction <add>, %38, %cst_14 [1] : vector<8x8xf32> to vector<8xf32>
    %40 = vector.shape_cast %39 : vector<8xf32> to vector<8x1xf32>
    %41 = tpu.reciprocal %40 {approx = true} : vector<8x1xf32> -> vector<8x1xf32>
    %42 = vector.broadcast %41 : vector<8x1xf32> to vector<8x8xf32>
    %43 = arith.mulf %38, %42 : vector<8x8xf32>
    %44 = arith.truncf %43 : vector<8x8xf32> to vector<8x8xbf16>
    %45 = arith.truncf %30 : vector<8x8xf32> to vector<8x8xbf16>
    %cst_15 = arith.constant dense<0.000000e+00> : vector<8x8xf32>
    %46 = tpu.matmul %44, %45, %cst_15 {dimension_numbers = #tpu.dot_dimension_numbers<[1], [0], [0], [1], [0, 0, 1, 1], [], []>} : vector<8x8xbf16>, vector<8x8xbf16>, vector<8x8xf32> -> vector<8x8xf32>
    %47 = vector.extract_strided_slice %8 {offsets = [0, 16], sizes = [8, 8], strides = [1, 1]} : vector<8x96xf32> to vector<8x8xf32>
    %48 = vector.extract_strided_slice %8 {offsets = [0, 48], sizes = [8, 8], strides = [1, 1]} : vector<8x96xf32> to vector<8x8xf32>
    %49 = vector.extract_strided_slice %8 {offsets = [0, 80], sizes = [8, 8], strides = [1, 1]} : vector<8x96xf32> to vector<8x8xf32>
    %50 = arith.truncf %47 : vector<8x8xf32> to vector<8x8xbf16>
    %51 = arith.truncf %48 : vector<8x8xf32> to vector<8x8xbf16>
    %cst_16 = arith.constant dense<0.000000e+00> : vector<8x8xf32>
    %52 = tpu.matmul %50, %51, %cst_16 {dimension_numbers = #tpu.dot_dimension_numbers<[1], [1], [0], [0], [0, 0, 1, 0], [], []>} : vector<8x8xbf16>, vector<8x8xbf16>, vector<8x8xf32> -> vector<8x8xf32>
    %cst_17 = arith.constant dense<0xFF800000> : vector<8xf32>
    %53 = vector.multi_reduction <maximumf>, %52, %cst_17 [1] : vector<8x8xf32> to vector<8xf32>
    %54 = vector.shape_cast %53 : vector<8xf32> to vector<8x1xf32>
    %55 = vector.broadcast %54 : vector<8x1xf32> to vector<8x8xf32>
    %56 = arith.subf %52, %55 : vector<8x8xf32>
    %57 = math.exp %56 : vector<8x8xf32>
    %cst_18 = arith.constant dense<0.000000e+00> : vector<8xf32>
    %58 = vector.multi_reduction <add>, %57, %cst_18 [1] : vector<8x8xf32> to vector<8xf32>
    %59 = vector.shape_cast %58 : vector<8xf32> to vector<8x1xf32>
    %60 = tpu.reciprocal %59 {approx = true} : vector<8x1xf32> -> vector<8x1xf32>
    %61 = vector.broadcast %60 : vector<8x1xf32> to vector<8x8xf32>
    %62 = arith.mulf %57, %61 : vector<8x8xf32>
    %63 = arith.truncf %62 : vector<8x8xf32> to vector<8x8xbf16>
    %64 = arith.truncf %49 : vector<8x8xf32> to vector<8x8xbf16>
    %cst_19 = arith.constant dense<0.000000e+00> : vector<8x8xf32>
    %65 = tpu.matmul %63, %64, %cst_19 {dimension_numbers = #tpu.dot_dimension_numbers<[1], [0], [0], [1], [0, 0, 1, 1], [], []>} : vector<8x8xbf16>, vector<8x8xbf16>, vector<8x8xf32> -> vector<8x8xf32>
    %66 = vector.extract_strided_slice %8 {offsets = [0, 24], sizes = [8, 8], strides = [1, 1]} : vector<8x96xf32> to vector<8x8xf32>
    %67 = vector.extract_strided_slice %8 {offsets = [0, 56], sizes = [8, 8], strides = [1, 1]} : vector<8x96xf32> to vector<8x8xf32>
    %68 = vector.extract_strided_slice %8 {offsets = [0, 88], sizes = [8, 8], strides = [1, 1]} : vector<8x96xf32> to vector<8x8xf32>
    %69 = arith.truncf %66 : vector<8x8xf32> to vector<8x8xbf16>
    %70 = arith.truncf %67 : vector<8x8xf32> to vector<8x8xbf16>
    %cst_20 = arith.constant dense<0.000000e+00> : vector<8x8xf32>
    %71 = tpu.matmul %69, %70, %cst_20 {dimension_numbers = #tpu.dot_dimension_numbers<[1], [1], [0], [0], [0, 0, 1, 0], [], []>} : vector<8x8xbf16>, vector<8x8xbf16>, vector<8x8xf32> -> vector<8x8xf32>
    %cst_21 = arith.constant dense<0xFF800000> : vector<8xf32>
    %72 = vector.multi_reduction <maximumf>, %71, %cst_21 [1] : vector<8x8xf32> to vector<8xf32>
    %73 = vector.shape_cast %72 : vector<8xf32> to vector<8x1xf32>
    %74 = vector.broadcast %73 : vector<8x1xf32> to vector<8x8xf32>
    %75 = arith.subf %71, %74 : vector<8x8xf32>
    %76 = math.exp %75 : vector<8x8xf32>
    %cst_22 = arith.constant dense<0.000000e+00> : vector<8xf32>
    %77 = vector.multi_reduction <add>, %76, %cst_22 [1] : vector<8x8xf32> to vector<8xf32>
    %78 = vector.shape_cast %77 : vector<8xf32> to vector<8x1xf32>
    %79 = tpu.reciprocal %78 {approx = true} : vector<8x1xf32> -> vector<8x1xf32>
    %80 = vector.broadcast %79 : vector<8x1xf32> to vector<8x8xf32>
    %81 = arith.mulf %76, %80 : vector<8x8xf32>
    %82 = arith.truncf %81 : vector<8x8xf32> to vector<8x8xbf16>
    %83 = arith.truncf %68 : vector<8x8xf32> to vector<8x8xbf16>
    %cst_23 = arith.constant dense<0.000000e+00> : vector<8x8xf32>
    %84 = tpu.matmul %82, %83, %cst_23 {dimension_numbers = #tpu.dot_dimension_numbers<[1], [0], [0], [1], [0, 0, 1, 1], [], []>} : vector<8x8xbf16>, vector<8x8xbf16>, vector<8x8xf32> -> vector<8x8xf32>
    %85 = tpu.concatenate %27, %46, %65, %84 in 1 : vector<8x8xf32>, vector<8x8xf32>, vector<8x8xf32>, vector<8x8xf32> -> vector<8x32xf32>
    %86 = arith.truncf %85 : vector<8x32xf32> to vector<8x32xbf16>
    %c0_24 = arith.constant 0 : index
    %c0_25 = arith.constant 0 : index
    %c0_26 = arith.constant 0 : index
    %87 = vector.load %arg5[%c0_24, %c0_25, %c0_26] : memref<1x32x32xbf16, #tpu.memory_space<vmem>>, vector<1x32x32xbf16>
    %88 = vector.shape_cast %87 : vector<1x32x32xbf16> to vector<32x32xbf16>
    %cst_27 = arith.constant dense<0.000000e+00> : vector<8x32xf32>
    %89 = tpu.matmul %86, %88, %cst_27 {dimension_numbers = #tpu.dot_dimension_numbers<[1], [0], [0], [1], [0, 0, 1, 1], [], []>} : vector<8x32xbf16>, vector<32x32xbf16>, vector<8x32xf32> -> vector<8x32xf32>
    %c0_i32 = arith.constant 0 : i32
    %90 = arith.cmpi eq, %arg1, %c0_i32 : i32
    %91 = arith.extui %90 : i1 to i32
    %c0_i32_28 = arith.constant 0 : i32
    %92 = arith.cmpi ne, %91, %c0_i32_28 : i32
    scf.if %92 {
      %c0_31 = arith.constant 0 : index
      %c0_32 = arith.constant 0 : index
      %96 = vector.load %arg6[%c0_31, %c0_32] : memref<1x32xf32, #tpu.memory_space<vmem>>, vector<1x32xf32>
      %97 = vector.broadcast %96 : vector<1x32xf32> to vector<8x32xf32>
      %98 = arith.addf %89, %97 : vector<8x32xf32>
      %c0_33 = arith.constant 0 : index
      %c0_34 = arith.constant 0 : index
      %c0_35 = arith.constant 0 : index
      %99 = vector.load %arg7[%c0_33, %c0_34, %c0_35] : memref<1x8x32xf32, #tpu.memory_space<vmem>>, vector<1x8x32xf32>
      %100 = vector.shape_cast %99 : vector<1x8x32xf32> to vector<8x32xf32>
      %101 = vector.shape_cast %98 : vector<8x32xf32> to vector<1x8x32xf32>
      tpu.vector_store %arg7[%c0_33, %c0_34, %c0_35], %101 {strides = array<i32>} : memref<1x8x32xf32, #tpu.memory_space<vmem>>, vector<1x8x32xf32>,
    } else {
    }
    %c0_i32_29 = arith.constant 0 : i32
    %93 = arith.cmpi sgt, %arg1, %c0_i32_29 : i32
    %94 = arith.extui %93 : i1 to i32
    %c0_i32_30 = arith.constant 0 : i32
    %95 = arith.cmpi ne, %94, %c0_i32_30 : i32
    scf.if %95 {
      %c0_31 = arith.constant 0 : index
      %c0_32 = arith.constant 0 : index
      %c0_33 = arith.constant 0 : index
      %96 = vector.load %arg7[%c0_31, %c0_32, %c0_33] : memref<1x8x32xf32, #tpu.memory_space<vmem>>, vector<1x8x32xf32>
      %97 = vector.shape_cast %96 : vector<1x8x32xf32> to vector<8x32xf32>
      %98 = arith.addf %97, %89 : vector<8x32xf32>
      %c0_34 = arith.constant 0 : index
      %c0_35 = arith.constant 0 : index
      %c0_36 = arith.constant 0 : index
      %99 = vector.load %arg7[%c0_34, %c0_35, %c0_36] : memref<1x8x32xf32, #tpu.memory_space<vmem>>, vector<1x8x32xf32>
      %100 = vector.shape_cast %99 : vector<1x8x32xf32> to vector<8x32xf32>
      %101 = vector.shape_cast %98 : vector<8x32xf32> to vector<1x8x32xf32>
      tpu.vector_store %arg7[%c0_34, %c0_35, %c0_36], %101 {strides = array<i32>} : memref<1x8x32xf32, #tpu.memory_space<vmem>>, vector<1x8x32xf32>,
    } else {
    }
    return
  }
  func.func @transform_0(%arg0: i32, %arg1: i32) -> (i32, i32, i32) {
    %c0_i32 = arith.constant 0 : i32
    %c0_i32_0 = arith.constant 0 : i32
    %c0_i32_1 = arith.constant 0 : i32
    return %arg0, %c0_i32, %c0_i32_0 : i32, i32, i32
  }
  func.func @transform_1(%arg0: i32, %arg1: i32) -> (i32, i32, i32) {
    %c0_i32 = arith.constant 0 : i32
    %c0_i32_0 = arith.constant 0 : i32
    %c0_i32_1 = arith.constant 0 : i32
    return %arg1, %c0_i32, %c0_i32_0 : i32, i32, i32
  }
  func.func @transform_2(%arg0: i32, %arg1: i32) -> (i32, i32, i32) {
    %c0_i32 = arith.constant 0 : i32
    %c0_i32_0 = arith.constant 0 : i32
    %c0_i32_1 = arith.constant 0 : i32
    return %arg1, %c0_i32, %c0_i32_0 : i32, i32, i32
  }
  func.func @transform_3(%arg0: i32, %arg1: i32) -> (i32, i32, i32) {
    %c0_i32 = arith.constant 0 : i32
    %c0_i32_0 = arith.constant 0 : i32
    %c0_i32_1 = arith.constant 0 : i32
    return %arg1, %c0_i32, %c0_i32_0 : i32, i32, i32
  }
  func.func @transform_4(%arg0: i32, %arg1: i32) -> (i32, i32) {
    %c0_i32 = arith.constant 0 : i32
    %c0_i32_0 = arith.constant 0 : i32
    %c0_i32_1 = arith.constant 0 : i32
    return %c0_i32, %c0_i32_0 : i32, i32
  }
  func.func @transform_5(%arg0: i32, %arg1: i32) -> (i32, i32, i32) {
    %c0_i32 = arith.constant 0 : i32
    %c0_i32_0 = arith.constant 0 : i32
    %c0_i32_1 = arith.constant 0 : i32
    return %arg0, %c0_i32, %c0_i32_0 : i32, i32, i32
  }
}

</mosaic_0001>

<llo_original>
// kernel: tpu_custom_call.1
$region0: #{tpu_custom_call.1}
  #allocation0 [shape = 'u32[]', space=smem, size = 0x4, offset = 0x4, fixed_abs, tag = 'smem constant byte address 0x4 - core index']
  #allocation1 [shape = 'u32[144,128]{1,0:T(1,128)}', space=vmem, size = 0x12000, scoped, tag = 'internal scratch']
  %s0 = inlined_call_operand.hbm [shape: bf16[2,8,32], index: 0, kind: input, shape index: {}]
  %s1 = inlined_call_operand.hbm [shape: bf16[1,32,96], index: 1, kind: input, shape index: {}]
  %s2 = inlined_call_operand.vmem [shape: f32[1,1,96], index: 2, kind: input, shape index: {}]
  %s3 = inlined_call_operand.hbm [shape: bf16[1,32,32], index: 3, kind: input, shape index: {}]
  %s4 = inlined_call_operand.vmem [shape: f32[1,32], index: 4, kind: input, shape index: {}]
  %s5 = inlined_call_operand.hbm [shape: f32[2,8,32], index: 5, kind: output, shape index: {}]
  %s6 = sld [smem:[#allocation0]]
  $region73: #{tpu_custom_call.1} parent=0
    _
  %s8 = ssub.s32 1, %s6
  %s9 = scalar_select 0, %s8, %s6
  $region1: #{tpu_custom_call.1} parent=0
    #allocation2 [shape = 'u8[4096]{0}', space=vmem, size = 0x1000, scoped, tag = 'input window, operand 0']
    #allocation3 [shape = 's32[2]{0}', space=sflag, size = 0x8, scoped, tag = 'scoped memory for tpu_custom_call.1']
    #allocation4 [shape = 's32[2]{0}', space=sflag, size = 0x8, scoped, tag = 'scoped memory for tpu_custom_call.1']
    #allocation5 [shape = 'u8[8192]{0}', space=vmem, size = 0x2000, scoped, tag = 'input window, operand 1, single buffered']
    #allocation6 [shape = 's32[1]{0}', space=sflag, size = 0x4, scoped, tag = 'scoped memory for tpu_custom_call.1']
    #allocation7 [shape = 'u8[8192]{0}', space=vmem, size = 0x2000, scoped, tag = 'input window, operand 3, single buffered']
    #allocation8 [shape = 'u8[8192]{0}', space=vmem, size = 0x2000, scoped, tag = 'output window, operand 0']
    %10 = vsyncpa [#allocation3], 0
    %s11 = scalar_lea.sflag [#allocation3], 1
    %12 = vsyncpa %s11, 0
    %13 = vsyncpa [#allocation6], 0
    %14 = vsyncpa [#allocation4], 0
    %s15 = scalar_lea.sflag [#allocation4], 1
    %16 = vsyncpa %s15, 0
    loop: start=0, step=1, limit=4
    $region2: #{tpu_custom_call.1} parent=1 // loop_pre_header
      _
    $region3: #{tpu_custom_call.1} parent=1 // loop_header
      %s18 = sphi 0, %s22
      %p19 = scmp.ge.s32.totalorder %s18, 4
      %s25 = sphi 0, %s37
      %s26 = sphi 0, %s33
      %s27 = sphi 0, %s25
      %s28 = sphi 0, %s26
      %s29 = sphi 0, %s27
      %s30 = sphi 0, %s28
      %s40 = sphi 0, %s42
      %s43 = sphi 0, %s40
      %s44 = sphi 0, %s43
      %s60 = sphi 0, %s44
      %s66 = sphi 0, %s68
      %s69 = sphi 0, %s66
      %s70 = sphi 0, %s69
      %s86 = sphi 0, %s70
      %s92 = sphi 0, %s94
      %s95 = sphi 0, %s92
      %s96 = sphi 0, %s95
      %s112 = sphi 0, %s96
      %s118 = sphi 0, %s120
      %s121 = sphi 0, %s118
      %s122 = sphi 0, %s121
      %s138 = sphi 0, %s122
      %s142 = sphi 0, %s142
      %s144 = sphi 0, %s142
      %s145 = sphi 0, %s144
      %s159 = sphi 0, %s145
      %s165 = sphi 0, %s167
      %s168 = sphi 0, %s165
      %s169 = sphi 0, %s168
      %s185 = sphi 0, %s169
    $region4: #{tpu_custom_call.1} parent=1 // loop_header_branch
      %21 = sbr.rel (%p19) target = $region8
    $region5: #{tpu_custom_call.1} parent=1 // loop_body
      %s23 = ssub.s32 %s18, 1
      %s24 = ssub.s32 %s18, 2
      %s31 = sadd.s32 1, %s26
      %p32 = scmp.ge.s32.totalorder %s31, 1
      %s33 = scalar_select %p32, 0, %s31
      %s34 = sadd.s32 1, %s25
      %s35 = scalar_select %p32, %s34, %s25
      %p36 = scmp.ge.s32.totalorder %s35, 2
      %s37 = scalar_select %p36, 0, %s35
      %s38 = ssub.s32 %s25, %s37
      %p39 = scmp.eq.s32.totalorder %s38, 0
      %s41 = sadd.s32 %s40, 1
      %s42 = scalar_select %p39, %s40, %s41
      %p45 = pneg %p39
      %p46 = scmp.eq.s32.totalorder %s18, 1
      %p47 = por %p45, %p46
      %p48 = scmp.ne.s32.totalorder %s40, %s43
      %p49 = scmp.eq.s32.totalorder %s18, 0
      %p50 = por %p48, %p49
      %p51 = scmp.ne.s32.totalorder %s40, %s43
      %p52 = scmp.eq.s32.totalorder %s23, 1
      %p53 = por %p51, %p52
      %p54 = scmp.ne.s32.totalorder %s43, %s44
      %p55 = scmp.eq.s32.totalorder %s23, 0
      %p56 = por %p54, %p55
      %p57 = scmp.ne.s32.totalorder %s43, %s44
      %p58 = scmp.eq.s32.totalorder %s24, 1
      %p59 = por %p57, %p58
      %p61 = scmp.ne.s32.totalorder %s44, %s60
      %p62 = scmp.eq.s32.totalorder %s24, 0
      %p63 = por %p61, %p62
      %s64 = ssub.s32 %s26, %s33
      %p65 = scmp.eq.s32.totalorder %s64, 0
      %s67 = sadd.s32 %s66, 1
      %s68 = scalar_select %p65, %s66, %s67
      %p71 = pneg %p65
      %p72 = scmp.eq.s32.totalorder %s18, 1
      %p73 = por %p71, %p72
      %p74 = scmp.ne.s32.totalorder %s66, %s69
      %p75 = scmp.eq.s32.totalorder %s18, 0
      %p76 = por %p74, %p75
      %p77 = scmp.ne.s32.totalorder %s66, %s69
      %p78 = scmp.eq.s32.totalorder %s23, 1
      %p79 = por %p77, %p78
      %p80 = scmp.ne.s32.totalorder %s69, %s70
      %p81 = scmp.eq.s32.totalorder %s23, 0
      %p82 = por %p80, %p81
      %p83 = scmp.ne.s32.totalorder %s69, %s70
      %p84 = scmp.eq.s32.totalorder %s24, 1
      %p85 = por %p83, %p84
      %p87 = scmp.ne.s32.totalorder %s70, %s86
      %p88 = scmp.eq.s32.totalorder %s24, 0
      %p89 = por %p87, %p88
      %s90 = ssub.s32 %s26, %s33
      %p91 = scmp.eq.s32.totalorder %s90, 0
      %s93 = sadd.s32 %s92, 1
      %s94 = scalar_select %p91, %s92, %s93
      %p97 = pneg %p91
      %p98 = scmp.eq.s32.totalorder %s18, 1
      %p99 = por %p97, %p98
      %p100 = scmp.ne.s32.totalorder %s92, %s95
      %p101 = scmp.eq.s32.totalorder %s18, 0
      %p102 = por %p100, %p101
      %p103 = scmp.ne.s32.totalorder %s92, %s95
      %p104 = scmp.eq.s32.totalorder %s23, 1
      %p105 = por %p103, %p104
      %p106 = scmp.ne.s32.totalorder %s95, %s96
      %p107 = scmp.eq.s32.totalorder %s23, 0
      %p108 = por %p106, %p107
      %p109 = scmp.ne.s32.totalorder %s95, %s96
      %p110 = scmp.eq.s32.totalorder %s24, 1
      %p111 = por %p109, %p110
      %p113 = scmp.ne.s32.totalorder %s96, %s112
      %p114 = scmp.eq.s32.totalorder %s24, 0
      %p115 = por %p113, %p114
      %s116 = ssub.s32 %s26, %s33
      %p117 = scmp.eq.s32.totalorder %s116, 0
      %s119 = sadd.s32 %s118, 1
      %s120 = scalar_select %p117, %s118, %s119
      %p123 = pneg %p117
      %p124 = scmp.eq.s32.totalorder %s18, 1
      %p125 = por %p123, %p124
      %p126 = scmp.ne.s32.totalorder %s118, %s121
      %p127 = scmp.eq.s32.totalorder %s18, 0
      %p128 = por %p126, %p127
      %p129 = scmp.ne.s32.totalorder %s118, %s121
      %p130 = scmp.eq.s32.totalorder %s23, 1
      %p131 = por %p129, %p130
      %p132 = scmp.ne.s32.totalorder %s121, %s122
      %p133 = scmp.eq.s32.totalorder %s23, 0
      %p134 = por %p132, %p133
      %p135 = scmp.ne.s32.totalorder %s121, %s122
      %p136 = scmp.eq.s32.totalorder %s24, 1
      %p137 = por %p135, %p136
      %p139 = scmp.ne.s32.totalorder %s122, %s138
      %p140 = scmp.eq.s32.totalorder %s24, 0
      %p141 = por %p139, %p140
      %s143 = sadd.s32 %s142, 1
      %p146 = scmp.eq.s32.totalorder %s18, 1
      %p147 = scmp.ne.s32.totalorder %s142, %s144
      %p148 = scmp.eq.s32.totalorder %s18, 0
      %p149 = por %p147, %p148
      %p150 = scmp.ne.s32.totalorder %s142, %s144
      %p151 = scmp.eq.s32.totalorder %s23, 1
      %p152 = por %p150, %p151
      %p153 = scmp.ne.s32.totalorder %s144, %s145
      %p154 = scmp.eq.s32.totalorder %s23, 0
      %p155 = por %p153, %p154
      %p156 = scmp.ne.s32.totalorder %s144, %s145
      %p157 = scmp.eq.s32.totalorder %s24, 1
      %p158 = por %p156, %p157
      %p160 = scmp.ne.s32.totalorder %s145, %s159
      %p161 = scmp.eq.s32.totalorder %s24, 0
      %p162 = por %p160, %p161
      %s163 = ssub.s32 %s25, %s37
      %p164 = scmp.eq.s32.totalorder %s163, 0
      %s166 = sadd.s32 %s165, 1
      %s167 = scalar_select %p164, %s165, %s166
      %p170 = pneg %p164
      %p171 = scmp.eq.s32.totalorder %s18, 1
      %p172 = por %p170, %p171
      %p173 = scmp.ne.s32.totalorder %s165, %s168
      %p174 = scmp.eq.s32.totalorder %s18, 0
      %p175 = por %p173, %p174
      %p176 = scmp.ne.s32.totalorder %s165, %s168
      %p177 = scmp.eq.s32.totalorder %s23, 1
      %p178 = por %p176, %p177
      %p179 = scmp.ne.s32.totalorder %s168, %s169
      %p180 = scmp.eq.s32.totalorder %s23, 0
      %p181 = por %p179, %p180
      %p182 = scmp.ne.s32.totalorder %s168, %s169
      %p183 = scmp.eq.s32.totalorder %s24, 1
      %p184 = por %p182, %p183
      %p186 = scmp.ne.s32.totalorder %s169, %s185
      %p187 = scmp.eq.s32.totalorder %s24, 0
      %p188 = por %p186, %p187
      %p189 = scmp.le.s32.totalorder 1, %s18
      %p190 = scmp.lt.s32.totalorder %s18, 3
      %p191 = pnand %p189, %p190
      %p192 = pneg %p191
      // Predicated region
      $region9: #{tpu_custom_call.1} parent=5 // pred_check
        _
      $region10: #{tpu_custom_call.1} parent=5 // pred_check_branch
        %194 = sbr.rel (%p191) target = $region12
      $region11: #{tpu_custom_call.1} parent=5 // pred_region
        %s195 = ssub.s32 %s18, 1
        // Predicated region
        $region13: #{tpu_custom_call.1} parent=11 // pred_check
          %p196 = pneg %p82
        $region14: #{tpu_custom_call.1} parent=11 // pred_check_branch
          %198 = sbr.rel (%p196) target = $region16
        $region15: #{tpu_custom_call.1} parent=11 // pred_region
          %s200 = ssub.s32 256, 256
          %201 = vsyncadd [#allocation6], %s200
          %s202 = smul.addr %s28, 4
          %s203 = smul.addr %s202, 64
          %s204 = scalar_lea.hbm %s1, %s203
          %s205 = sshll.u32 [#allocation5], 4
          %s206 = int_to_ptr.vmem [resolvable:$true] %s205
          %211 = dma.hbm_to_vmem [thread:$0]  %s204, 256, %s206, [#allocation6], 64, 64, 4
        $region16: #{tpu_custom_call.1} parent=11 // pred_fallthru
          _
        // Predicated region
        $region17: #{tpu_custom_call.1} parent=11 // pred_check
          %p212 = pneg %p108
        $region18: #{tpu_custom_call.1} parent=11 // pred_check_branch
          %214 = sbr.rel (%p212) target = $region20
        $region19: #{tpu_custom_call.1} parent=11 // pred_region
          %p215 = scmp.lt.s32.totalorder %s28, 0
          %s216 = scalar_select %p215, %s28, 0
          %s217 = scalar_lea.vmem %s2, %s216
        $region20: #{tpu_custom_call.1} parent=11 // pred_fallthru
          _
        // Predicated region
        $region21: #{tpu_custom_call.1} parent=11 // pred_check
          %p218 = pneg %p134
        $region22: #{tpu_custom_call.1} parent=11 // pred_check_branch
          %220 = sbr.rel (%p218) target = $region24
        $region23: #{tpu_custom_call.1} parent=11 // pred_region
          %s222 = ssub.s32 256, 256
          %223 = vsyncadd [#allocation6], %s222
          %s224 = smul.addr %s28, 4
          %s225 = smul.addr %s224, 64
          %s226 = scalar_lea.hbm %s3, %s225
          %s227 = sshll.u32 [#allocation7], 4
          %s228 = int_to_ptr.vmem [resolvable:$true] %s227
          %233 = dma.hbm_to_vmem [thread:$0]  %s226, 256, %s228, [#allocation6], 64, 64, 4
        $region24: #{tpu_custom_call.1} parent=11 // pred_fallthru
          _
        // Predicated region
        $region25: #{tpu_custom_call.1} parent=11 // pred_check
          %p234 = pneg %p155
        $region26: #{tpu_custom_call.1} parent=11 // pred_check_branch
          %236 = sbr.rel (%p234) target = $region28
        $region27: #{tpu_custom_call.1} parent=11 // pred_region
          _
        $region28: #{tpu_custom_call.1} parent=11 // pred_fallthru
          _
      $region12: #{tpu_custom_call.1} parent=5 // pred_fallthru
        _
      %p237 = scmp.lt.s32.totalorder %s18, 2
      // Predicated region
      $region29: #{tpu_custom_call.1} parent=5 // pred_check
        %p238 = pneg %p237
      $region30: #{tpu_custom_call.1} parent=5 // pred_check_branch
        %240 = sbr.rel (%p238) target = $region32
      $region31: #{tpu_custom_call.1} parent=5 // pred_region
        // Predicated region
        $region33: #{tpu_custom_call.1} parent=31 // pred_check
          %p241 = pneg %p50
        $region34: #{tpu_custom_call.1} parent=31 // pred_check_branch
          %243 = sbr.rel (%p241) target = $region36
        $region35: #{tpu_custom_call.1} parent=31 // pred_region
          %s244 = sand.u32 %s40, 1
          %s245 = scalar_lea.sflag [#allocation3], %s244
          %s246 = sand.u32 %s40, 1
          %s247 = smul.addr %s246, 4
          %s248 = scalar_lea.vmem [#allocation2], %s247
          %s250 = ssub.s32 64, 64
          %251 = vsyncadd %s245, %s250
          %s252 = smul.addr %s25, 64
          %s253 = scalar_lea.hbm %s0, %s252
          %s255 = sshll.u32 %s248, 4
          %s256 = int_to_ptr.vmem [resolvable:$true] %s255
          %258 = dma.hbm_to_vmem [thread:$0]  %s253, 64, %s256, %s245
        $region36: #{tpu_custom_call.1} parent=31 // pred_fallthru
          _
      $region32: #{tpu_custom_call.1} parent=5 // pred_fallthru
        _
      %p259 = scmp.le.s32.totalorder 1, %s18
      %p260 = scmp.lt.s32.totalorder %s18, 3
      %p261 = pnand %p259, %p260
      %p262 = pneg %p261
      // Predicated region
      $region37: #{tpu_custom_call.1} parent=5 // pred_check
        _
      $region38: #{tpu_custom_call.1} parent=5 // pred_check_branch
        %264 = sbr.rel (%p261) target = $region40
      $region39: #{tpu_custom_call.1} parent=5 // pred_region
        %s265 = ssub.s32 %s18, 1
        %s266 = sand.u32 %s43, 1
        %s267 = scalar_lea.sflag [#allocation3], %s266
        %s268 = sand.u32 %s43, 1
        %s269 = smul.addr %s268, 4
        %s270 = scalar_lea.vmem [#allocation2], %s269
        // Predicated region
        $region41: #{tpu_custom_call.1} parent=39 // pred_check
          %p271 = pneg %p56
        $region42: #{tpu_custom_call.1} parent=39 // pred_check_branch
          %273 = sbr.rel (%p271) target = $region44
        $region43: #{tpu_custom_call.1} parent=39 // pred_region
          %274 = dma.done %s267, 64
        $region44: #{tpu_custom_call.1} parent=39 // pred_fallthru
          _
        // Predicated region
        $region45: #{tpu_custom_call.1} parent=39 // pred_check
          %p275 = pneg %p82
        $region46: #{tpu_custom_call.1} parent=39 // pred_check_branch
          %277 = sbr.rel (%p275) target = $region48
        $region47: #{tpu_custom_call.1} parent=39 // pred_region
          %278 = dma.done [#allocation6], 256
        $region48: #{tpu_custom_call.1} parent=39 // pred_fallthru
          _
        // Predicated region
        $region49: #{tpu_custom_call.1} parent=39 // pred_check
          %p279 = pneg %p134
        $region50: #{tpu_custom_call.1} parent=39 // pred_check_branch
          %281 = sbr.rel (%p279) target = $region52
        $region51: #{tpu_custom_call.1} parent=39 // pred_region
          %282 = dma.done [#allocation6], 256
        $region52: #{tpu_custom_call.1} parent=39 // pred_fallthru
          _
        %s283 = sand.u32 %s43, 1
        %s284 = scalar_lea.sflag [#allocation3], %s283
        %s285 = sand.u32 %s43, 1
        %s286 = smul.addr %s285, 4
        %s287 = scalar_lea.vmem [#allocation2], %s286
        %p288 = pneg %p56
        %p289 = pneg %p53
        %p290 = pneg %p82
        %p291 = pneg %p79
        %p292 = scmp.lt.s32.totalorder %s28, 0
        %s293 = scalar_select %p292, %s28, 0
        %s294 = scalar_lea.vmem %s2, %s293
        %p295 = pneg %p108
        %p296 = pneg %p105
        %p297 = pneg %p134
        %p298 = pneg %p131
        %p299 = pneg %p155
        %p300 = pneg %p152
        %p301 = pneg %p181
        %p302 = pneg %p178
        %s303 = sand.u32 %s168, 1
        %s304 = scalar_lea.sflag [#allocation4], %s303
        %s305 = sand.u32 %s168, 1
        %s306 = smul.addr %s305, 8
        %s307 = scalar_lea.vmem [#allocation8], %s306
        %p308 = scmp.lt.s32.totalorder %s28, 0
        %s309 = scalar_select %p308, %s28, 0
        %s310 = scalar_lea.vmem %s2, %s309
        %v312 = vld [vmem:[%s270] sm:$0xf]
        %v313 = vld [vmem:[#allocation5] sm:$0xf]
        %v314 = vld [vmem:[#allocation5 + $0x4] sm:$0xf]
        %v315 = vld [vmem:[#allocation5 + $0x8] sm:$0xf]
        %v316 = vld [vmem:[#allocation5 + $0xc] sm:$0xf]
        %v317 = vld [vmem:[%s310] sm:$0x1]
        %v319 = vlaneseq
        %v320 = vshrl.u32 %v319, 7
        %v321 = vsub.s32 0, %v320
        %v322 = vrot.slane %v317, %v321
        %v328 = vunpack.c.l.b16 %v313
        %v329 = vunpack.c.l.b16 %v314
        %v330 = vunpack.c.l.b16 %v315
        %v331 = vunpack.c.l.b16 %v316
        %v332 = vpack.c.b16 %v329, %v328
        %v333 = vpack.c.b16 %v331, %v330
        %vm336 = vcmask 261120
        %v338 = vsel %vm336, %v312, 0
        %340 = vmatprep.subr.bf16.mxu0 0
        %341 = vmatpush1.bf16.msra.mxu0 %v332
        %342 = vmatprep.subr.bf16.mxu0 0
        %343 = vmatpush1.bf16.msra.mxu0 %v333
        %344 = vmatprep.subr.bf16.mxu0 0
        %345 = vmatpush1.bf16.msra.mxu0 0
        %346 = vmatprep.subr.bf16.mxu0 0
        %347 = vmatpush1.bf16.msra.mxu0 0
        %348 = vmatprep.subr.bf16.mxu0 0
        %349 = vmatpush1.bf16.msra.mxu0 0
        %350 = vmatprep.subr.bf16.mxu0 0
        %351 = vmatpush1.bf16.msra.mxu0 0
        %352 = vmatprep.subr.bf16.mxu0 0
        %353 = vmatpush1.bf16.msra.mxu0 0
        %354 = vmatprep.subr.bf16.mxu0 0
        %355 = vmatpush1.bf16.msra.mxu0 0
        %356 = vmatprep.subr.bf16.mxu0 0
        %357 = vmatpush1.bf16.msra.mxu0 0
        %358 = vmatprep.subr.bf16.mxu0 0
        %359 = vmatpush1.bf16.msra.mxu0 0
        %360 = vmatprep.subr.bf16.mxu0 0
        %361 = vmatpush1.bf16.msra.mxu0 0
        %362 = vmatprep.subr.bf16.mxu0 0
        %363 = vmatpush1.bf16.msra.mxu0 0
        %364 = vmatprep.subr.bf16.mxu0 0
        %365 = vmatpush1.bf16.msra.mxu0 0
        %366 = vmatprep.subr.bf16.mxu0 0
        %367 = vmatpush1.bf16.msra.mxu0 0
        %368 = vmatprep.subr.bf16.mxu0 0
        %369 = vmatpush1.bf16.msra.mxu0 0
        %370 = vmatprep.subr.bf16.mxu0 0
        %371 = vmatpush1.bf16.msra.mxu0 0
        %372 = vmatprep.mubr.bf16.mxu0 0
        %373 = vmatmul.mubr.bf16.gmra.mrb[0].mxu0 %v338
        %v374 = vpop.f32.mrb[0].mxu0
        %v375 = vadd.f32 %v322, %v374
        %v376 = vpop.f32.mrb[0].mxu0
        %v377 = vpop.f32.mrb[0].mxu0
        %v378 = vpop.f32.mrb[0].mxu0
        %379 = vdwg.mxu0
        %v380 = vpack.c.bf16 %v375, %v375
        %382 = vrot.lane.b32.xlu0 %v380, 96
        %v383 = vpop.permute.xlu0 %382
        %vm384 = vcmask 64512
        %v386 = vsel %vm384, %v380, 0
        %v389 = vsel %vm384, %v383, 0
        %391 = vmatprep.subr.bf16.mxu0 0
        %392 = vmatpush1.bf16.xpose.msra.mxu0 %v389
        %393 = vmatprep.subr.bf16.mxu0 0
        %394 = vmatpush1.bf16.xpose.msra.mxu0 0
        %395 = vmatprep.subr.bf16.mxu0 0
        %396 = vmatpush1.bf16.xpose.msra.mxu0 0
        %397 = vmatprep.subr.bf16.mxu0 0
        %398 = vmatpush1.bf16.xpose.msra.mxu0 0
        %399 = vmatprep.subr.bf16.mxu0 0
        %400 = vmatpush1.bf16.xpose.msra.mxu0 0
        %401 = vmatprep.subr.bf16.mxu0 0
        %402 = vmatpush1.bf16.xpose.msra.mxu0 0
        %403 = vmatprep.subr.bf16.mxu0 0
        %404 = vmatpush1.bf16.xpose.msra.mxu0 0
        %405 = vmatprep.subr.bf16.mxu0 0
        %406 = vmatpush1.bf16.xpose.msra.mxu0 0
        %407 = vmatprep.subr.bf16.mxu0 0
        %408 = vmatpush1.bf16.xpose.msra.mxu0 0
        %409 = vmatprep.subr.bf16.mxu0 0
        %410 = vmatpush1.bf16.xpose.msra.mxu0 0
        %411 = vmatprep.subr.bf16.mxu0 0
        %412 = vmatpush1.bf16.xpose.msra.mxu0 0
        %413 = vmatprep.subr.bf16.mxu0 0
        %414 = vmatpush1.bf16.xpose.msra.mxu0 0
        %415 = vmatprep.subr.bf16.mxu0 0
        %416 = vmatpush1.bf16.xpose.msra.mxu0 0
        %417 = vmatprep.subr.bf16.mxu0 0
        %418 = vmatpush1.bf16.xpose.msra.mxu0 0
        %419 = vmatprep.subr.bf16.mxu0 0
        %420 = vmatpush1.bf16.xpose.msra.mxu0 0
        %421 = vmatprep.subr.bf16.mxu0 0
        %422 = vmatpush1.bf16.xpose.msra.mxu0 0
        %423 = vmatprep.mubr.bf16.mxu0 0
        %424 = vmatmul.mubr.bf16.gmra.mrb[0].mxu0 %v386
        %v425 = vpop.f32.mrb[0].mxu0
        %v426 = vadd.f32 0.0, %v425
        %v427 = vpop.f32.mrb[0].mxu0
        %v428 = vpop.f32.mrb[0].mxu0
        %v429 = vpop.f32.mrb[0].mxu0
        %430 = vdwg.mxu0
        %v431 = vsel %vm384, %v426, -inf
        %432 = vmax.xlane.f32.xlu0 %v431
        %v433 = vpop.xlane.xlu0 %432
        %v434 = vsub.f32 %v426, %v433
        %v435 = vmul.f32 %v434, 1.442695
        %v436 = vpow.pop %v435
        %v437 = vsel %vm384, %v436, 0.0
        %438 = vadd.xlane.f32.xlu0 %v437
        %v439 = vpop.xlane.xlu0 %438
        %v440 = vrcp.pop %v439
        %v441 = vmul.f32 %v436, %v440
        %v442 = vpack.c.bf16 %v441, %v441
        %443 = vrot.lane.b32.xlu0 %v380, 64
        %v444 = vpop.permute.xlu0 %443
        %v446 = vsel %vm384, %v442, 0
        %vm448 = vcmask 1043456
        %v450 = vsel %vm448, %v444, 0
        %452 = vmatprep.subr.bf16.mxu0 0
        %453 = vmatpush1.bf16.msra.mxu0 %v450
        %454 = vmatprep.subr.bf16.mxu0 0
        %455 = vmatpush1.bf16.msra.mxu0 0
        %456 = vmatprep.subr.bf16.mxu0 0
        %457 = vmatpush1.bf16.msra.mxu0 0
        %458 = vmatprep.subr.bf16.mxu0 0
        %459 = vmatpush1.bf16.msra.mxu0 0
        %460 = vmatprep.subr.bf16.mxu0 0
        %461 = vmatpush1.bf16.msra.mxu0 0
        %462 = vmatprep.subr.bf16.mxu0 0
        %463 = vmatpush1.bf16.msra.mxu0 0
        %464 = vmatprep.subr.bf16.mxu0 0
        %465 = vmatpush1.bf16.msra.mxu0 0
        %466 = vmatprep.subr.bf16.mxu0 0
        %467 = vmatpush1.bf16.msra.mxu0 0
        %468 = vmatprep.subr.bf16.mxu0 0
        %469 = vmatpush1.bf16.msra.mxu0 0
        %470 = vmatprep.subr.bf16.mxu0 0
        %471 = vmatpush1.bf16.msra.mxu0 0
        %472 = vmatprep.subr.bf16.mxu0 0
        %473 = vmatpush1.bf16.msra.mxu0 0
        %474 = vmatprep.subr.bf16.mxu0 0
        %475 = vmatpush1.bf16.msra.mxu0 0
        %476 = vmatprep.subr.bf16.mxu0 0
        %477 = vmatpush1.bf16.msra.mxu0 0
        %478 = vmatprep.subr.bf16.mxu0 0
        %479 = vmatpush1.bf16.msra.mxu0 0
        %480 = vmatprep.subr.bf16.mxu0 0
        %481 = vmatpush1.bf16.msra.mxu0 0
        %482 = vmatprep.subr.bf16.mxu0 0
        %483 = vmatpush1.bf16.msra.mxu0 0
        %484 = vmatprep.mubr.bf16.mxu0 0
        %485 = vmatmul.mubr.bf16.gmra.mrb[0].mxu0 %v446
        %v486 = vpop.f32.mrb[0].mxu0
        %v487 = vadd.f32 0.0, %v486
        %v488 = vpop.f32.mrb[0].mxu0
        %v489 = vpop.f32.mrb[0].mxu0
        %v490 = vpop.f32.mrb[0].mxu0
        %491 = vdwg.mxu0
        %492 = vrot.lane.b32.xlu0 %v380, 120
        %v493 = vpop.permute.xlu0 %492
        %494 = vrot.lane.b32.xlu0 %v380, 88
        %v495 = vpop.permute.xlu0 %494
        %v497 = vsel %vm384, %v493, 0
        %v500 = vsel %vm384, %v495, 0
        %502 = vmatprep.subr.bf16.mxu0 0
        %503 = vmatpush1.bf16.xpose.msra.mxu0 %v500
        %504 = vmatprep.subr.bf16.mxu0 0
        %505 = vmatpush1.bf16.xpose.msra.mxu0 0
        %506 = vmatprep.subr.bf16.mxu0 0
        %507 = vmatpush1.bf16.xpose.msra.mxu0 0
        %508 = vmatprep.subr.bf16.mxu0 0
        %509 = vmatpush1.bf16.xpose.msra.mxu0 0
        %510 = vmatprep.subr.bf16.mxu0 0
        %511 = vmatpush1.bf16.xpose.msra.mxu0 0
        %512 = vmatprep.subr.bf16.mxu0 0
        %513 = vmatpush1.bf16.xpose.msra.mxu0 0
        %514 = vmatprep.subr.bf16.mxu0 0
        %515 = vmatpush1.bf16.xpose.msra.mxu0 0
        %516 = vmatprep.subr.bf16.mxu0 0
        %517 = vmatpush1.bf16.xpose.msra.mxu0 0
        %518 = vmatprep.subr.bf16.mxu0 0
        %519 = vmatpush1.bf16.xpose.msra.mxu0 0
        %520 = vmatprep.subr.bf16.mxu0 0
        %521 = vmatpush1.bf16.xpose.msra.mxu0 0
        %522 = vmatprep.subr.bf16.mxu0 0
        %523 = vmatpush1.bf16.xpose.msra.mxu0 0
        %524 = vmatprep.subr.bf16.mxu0 0
        %525 = vmatpush1.bf16.xpose.msra.mxu0 0
        %526 = vmatprep.subr.bf16.mxu0 0
        %527 = vmatpush1.bf16.xpose.msra.mxu0 0
        %528 = vmatprep.subr.bf16.mxu0 0
        %529 = vmatpush1.bf16.xpose.msra.mxu0 0
        %530 = vmatprep.subr.bf16.mxu0 0
        %531 = vmatpush1.bf16.xpose.msra.mxu0 0
        %532 = vmatprep.subr.bf16.mxu0 0
        %533 = vmatpush1.bf16.xpose.msra.mxu0 0
        %534 = vmatprep.mubr.bf16.mxu0 0
        %535 = vmatmul.mubr.bf16.gmra.mrb[0].mxu0 %v497
        %v536 = vpop.f32.mrb[0].mxu0
        %v537 = vadd.f32 0.0, %v536
        %v538 = vpop.f32.mrb[0].mxu0
        %v539 = vpop.f32.mrb[0].mxu0
        %v540 = vpop.f32.mrb[0].mxu0
        %541 = vdwg.mxu0
        %v542 = vsel %vm384, %v537, -inf
        %543 = vmax.xlane.f32.xlu0 %v542
        %v544 = vpop.xlane.xlu0 %543
        %v545 = vsub.f32 %v537, %v544
        %v546 = vmul.f32 %v545, 1.442695
        %v547 = vpow.pop %v546
        %v548 = vsel %vm384, %v547, 0.0
        %549 = vadd.xlane.f32.xlu0 %v548
        %v550 = vpop.xlane.xlu0 %549
        %v551 = vrcp.pop %v550
        %v552 = vmul.f32 %v547, %v551
        %v553 = vpack.c.bf16 %v552, %v552
        %554 = vrot.lane.b32.xlu0 %v380, 56
        %v555 = vpop.permute.xlu0 %554
        %v557 = vsel %vm384, %v553, 0
        %v560 = vsel %vm448, %v555, 0
        %562 = vmatprep.subr.bf16.mxu0 0
        %563 = vmatpush1.bf16.msra.mxu0 %v560
        %564 = vmatprep.subr.bf16.mxu0 0
        %565 = vmatpush1.bf16.msra.mxu0 0
        %566 = vmatprep.subr.bf16.mxu0 0
        %567 = vmatpush1.bf16.msra.mxu0 0
        %568 = vmatprep.subr.bf16.mxu0 0
        %569 = vmatpush1.bf16.msra.mxu0 0
        %570 = vmatprep.subr.bf16.mxu0 0
        %571 = vmatpush1.bf16.msra.mxu0 0
        %572 = vmatprep.subr.bf16.mxu0 0
        %573 = vmatpush1.bf16.msra.mxu0 0
        %574 = vmatprep.subr.bf16.mxu0 0
        %575 = vmatpush1.bf16.msra.mxu0 0
        %576 = vmatprep.subr.bf16.mxu0 0
        %577 = vmatpush1.bf16.msra.mxu0 0
        %578 = vmatprep.subr.bf16.mxu0 0
        %579 = vmatpush1.bf16.msra.mxu0 0
        %580 = vmatprep.subr.bf16.mxu0 0
        %581 = vmatpush1.bf16.msra.mxu0 0
        %582 = vmatprep.subr.bf16.mxu0 0
        %583 = vmatpush1.bf16.msra.mxu0 0
        %584 = vmatprep.subr.bf16.mxu0 0
        %585 = vmatpush1.bf16.msra.mxu0 0
        %586 = vmatprep.subr.bf16.mxu0 0
        %587 = vmatpush1.bf16.msra.mxu0 0
        %588 = vmatprep.subr.bf16.mxu0 0
        %589 = vmatpush1.bf16.msra.mxu0 0
        %590 = vmatprep.subr.bf16.mxu0 0
        %591 = vmatpush1.bf16.msra.mxu0 0
        %592 = vmatprep.subr.bf16.mxu0 0
        %593 = vmatpush1.bf16.msra.mxu0 0
        %594 = vmatprep.mubr.bf16.mxu0 0
        %595 = vmatmul.mubr.bf16.gmra.mrb[0].mxu0 %v557
        %v596 = vpop.f32.mrb[0].mxu0
        %v597 = vadd.f32 0.0, %v596
        %v598 = vpop.f32.mrb[0].mxu0
        %v599 = vpop.f32.mrb[0].mxu0
        %v600 = vpop.f32.mrb[0].mxu0
        %601 = vdwg.mxu0
        %602 = vrot.lane.b32.xlu0 %v380, 112
        %v603 = vpop.permute.xlu0 %602
        %604 = vrot.lane.b32.xlu0 %v380, 80
        %v605 = vpop.permute.xlu0 %604
        %v607 = vsel %vm384, %v603, 0
        %v610 = vsel %vm384, %v605, 0
        %612 = vmatprep.subr.bf16.mxu0 0
        %613 = vmatpush1.bf16.xpose.msra.mxu0 %v610
        %614 = vmatprep.subr.bf16.mxu0 0
        %615 = vmatpush1.bf16.xpose.msra.mxu0 0
        %616 = vmatprep.subr.bf16.mxu0 0
        %617 = vmatpush1.bf16.xpose.msra.mxu0 0
        %618 = vmatprep.subr.bf16.mxu0 0
        %619 = vmatpush1.bf16.xpose.msra.mxu0 0
        %620 = vmatprep.subr.bf16.mxu0 0
        %621 = vmatpush1.bf16.xpose.msra.mxu0 0
        %622 = vmatprep.subr.bf16.mxu0 0
        %623 = vmatpush1.bf16.xpose.msra.mxu0 0
        %624 = vmatprep.subr.bf16.mxu0 0
        %625 = vmatpush1.bf16.xpose.msra.mxu0 0
        %626 = vmatprep.subr.bf16.mxu0 0
        %627 = vmatpush1.bf16.xpose.msra.mxu0 0
        %628 = vmatprep.subr.bf16.mxu0 0
        %629 = vmatpush1.bf16.xpose.msra.mxu0 0
        %630 = vmatprep.subr.bf16.mxu0 0
        %631 = vmatpush1.bf16.xpose.msra.mxu0 0
        %632 = vmatprep.subr.bf16.mxu0 0
        %633 = vmatpush1.bf16.xpose.msra.mxu0 0
        %634 = vmatprep.subr.bf16.mxu0 0
        %635 = vmatpush1.bf16.xpose.msra.mxu0 0
        %636 = vmatprep.subr.bf16.mxu0 0
        %637 = vmatpush1.bf16.xpose.msra.mxu0 0
        %638 = vmatprep.subr.bf16.mxu0 0
        %639 = vmatpush1.bf16.xpose.msra.mxu0 0
        %640 = vmatprep.subr.bf16.mxu0 0
        %641 = vmatpush1.bf16.xpose.msra.mxu0 0
        %642 = vmatprep.subr.bf16.mxu0 0
        %643 = vmatpush1.bf16.xpose.msra.mxu0 0
        %644 = vmatprep.mubr.bf16.mxu0 0
        %645 = vmatmul.mubr.bf16.gmra.mrb[0].mxu0 %v607
        %v646 = vpop.f32.mrb[0].mxu0
        %v647 = vadd.f32 0.0, %v646
        %v648 = vpop.f32.mrb[0].mxu0
        %v649 = vpop.f32.mrb[0].mxu0
        %v650 = vpop.f32.mrb[0].mxu0
        %651 = vdwg.mxu0
        %v652 = vsel %vm384, %v647, -inf
        %653 = vmax.xlane.f32.xlu0 %v652
        %v654 = vpop.xlane.xlu0 %653
        %v655 = vsub.f32 %v647, %v654
        %v656 = vmul.f32 %v655, 1.442695
        %v657 = vpow.pop %v656
        %v658 = vsel %vm384, %v657, 0.0
        %659 = vadd.xlane.f32.xlu0 %v658
        %v660 = vpop.xlane.xlu0 %659
        %v661 = vrcp.pop %v660
        %v662 = vmul.f32 %v657, %v661
        %v663 = vpack.c.bf16 %v662, %v662
        %664 = vrot.lane.b32.xlu0 %v380, 48
        %v665 = vpop.permute.xlu0 %664
        %v667 = vsel %vm384, %v663, 0
        %v670 = vsel %vm448, %v665, 0
        %672 = vmatprep.subr.bf16.mxu0 0
        %673 = vmatpush1.bf16.msra.mxu0 %v670
        %674 = vmatprep.subr.bf16.mxu0 0
        %675 = vmatpush1.bf16.msra.mxu0 0
        %676 = vmatprep.subr.bf16.mxu0 0
        %677 = vmatpush1.bf16.msra.mxu0 0
        %678 = vmatprep.subr.bf16.mxu0 0
        %679 = vmatpush1.bf16.msra.mxu0 0
        %680 = vmatprep.subr.bf16.mxu0 0
        %681 = vmatpush1.bf16.msra.mxu0 0
        %682 = vmatprep.subr.bf16.mxu0 0
        %683 = vmatpush1.bf16.msra.mxu0 0
        %684 = vmatprep.subr.bf16.mxu0 0
        %685 = vmatpush1.bf16.msra.mxu0 0
        %686 = vmatprep.subr.bf16.mxu0 0
        %687 = vmatpush1.bf16.msra.mxu0 0
        %688 = vmatprep.subr.bf16.mxu0 0
        %689 = vmatpush1.bf16.msra.mxu0 0
        %690 = vmatprep.subr.bf16.mxu0 0
        %691 = vmatpush1.bf16.msra.mxu0 0
        %692 = vmatprep.subr.bf16.mxu0 0
        %693 = vmatpush1.bf16.msra.mxu0 0
        %694 = vmatprep.subr.bf16.mxu0 0
        %695 = vmatpush1.bf16.msra.mxu0 0
        %696 = vmatprep.subr.bf16.mxu0 0
        %697 = vmatpush1.bf16.msra.mxu0 0
        %698 = vmatprep.subr.bf16.mxu0 0
        %699 = vmatpush1.bf16.msra.mxu0 0
        %700 = vmatprep.subr.bf16.mxu0 0
        %701 = vmatpush1.bf16.msra.mxu0 0
        %702 = vmatprep.subr.bf16.mxu0 0
        %703 = vmatpush1.bf16.msra.mxu0 0
        %704 = vmatprep.mubr.bf16.mxu0 0
        %705 = vmatmul.mubr.bf16.gmra.mrb[0].mxu0 %v667
        %v706 = vpop.f32.mrb[0].mxu0
        %v707 = vadd.f32 0.0, %v706
        %v708 = vpop.f32.mrb[0].mxu0
        %v709 = vpop.f32.mrb[0].mxu0
        %v710 = vpop.f32.mrb[0].mxu0
        %711 = vdwg.mxu0
        %712 = vrot.lane.b32.xlu0 %v380, 104
        %v713 = vpop.permute.xlu0 %712
        %714 = vrot.lane.b32.xlu0 %v380, 72
        %v715 = vpop.permute.xlu0 %714
        %v717 = vsel %vm384, %v713, 0
        %v720 = vsel %vm384, %v715, 0
        %722 = vmatprep.subr.bf16.mxu0 0
        %723 = vmatpush1.bf16.xpose.msra.mxu0 %v720
        %724 = vmatprep.subr.bf16.mxu0 0
        %725 = vmatpush1.bf16.xpose.msra.mxu0 0
        %726 = vmatprep.subr.bf16.mxu0 0
        %727 = vmatpush1.bf16.xpose.msra.mxu0 0
        %728 = vmatprep.subr.bf16.mxu0 0
        %729 = vmatpush1.bf16.xpose.msra.mxu0 0
        %730 = vmatprep.subr.bf16.mxu0 0
        %731 = vmatpush1.bf16.xpose.msra.mxu0 0
        %732 = vmatprep.subr.bf16.mxu0 0
        %733 = vmatpush1.bf16.xpose.msra.mxu0 0
        %734 = vmatprep.subr.bf16.mxu0 0
        %735 = vmatpush1.bf16.xpose.msra.mxu0 0
        %736 = vmatprep.subr.bf16.mxu0 0
        %737 = vmatpush1.bf16.xpose.msra.mxu0 0
        %738 = vmatprep.subr.bf16.mxu0 0
        %739 = vmatpush1.bf16.xpose.msra.mxu0 0
        %740 = vmatprep.subr.bf16.mxu0 0
        %741 = vmatpush1.bf16.xpose.msra.mxu0 0
        %742 = vmatprep.subr.bf16.mxu0 0
        %743 = vmatpush1.bf16.xpose.msra.mxu0 0
        %744 = vmatprep.subr.bf16.mxu0 0
        %745 = vmatpush1.bf16.xpose.msra.mxu0 0
        %746 = vmatprep.subr.bf16.mxu0 0
        %747 = vmatpush1.bf16.xpose.msra.mxu0 0
        %748 = vmatprep.subr.bf16.mxu0 0
        %749 = vmatpush1.bf16.xpose.msra.mxu0 0
        %750 = vmatprep.subr.bf16.mxu0 0
        %751 = vmatpush1.bf16.xpose.msra.mxu0 0
        %752 = vmatprep.subr.bf16.mxu0 0
        %753 = vmatpush1.bf16.xpose.msra.mxu0 0
        %754 = vmatprep.mubr.bf16.mxu0 0
        %755 = vmatmul.mubr.bf16.gmra.mrb[0].mxu0 %v717
        %v756 = vpop.f32.mrb[0].mxu0
        %v757 = vadd.f32 0.0, %v756
        %v758 = vpop.f32.mrb[0].mxu0
        %v759 = vpop.f32.mrb[0].mxu0
        %v760 = vpop.f32.mrb[0].mxu0
        %761 = vdwg.mxu0
        %v762 = vsel %vm384, %v757, -inf
        %763 = vmax.xlane.f32.xlu0 %v762
        %v764 = vpop.xlane.xlu0 %763
        %v765 = vsub.f32 %v757, %v764
        %v766 = vmul.f32 %v765, 1.442695
        %v767 = vpow.pop %v766
        %v768 = vsel %vm384, %v767, 0.0
        %769 = vadd.xlane.f32.xlu0 %v768
        %v770 = vpop.xlane.xlu0 %769
        %v771 = vrcp.pop %v770
        %v772 = vmul.f32 %v767, %v771
        %v773 = vpack.c.bf16 %v772, %v772
        %774 = vrot.lane.b32.xlu0 %v380, 40
        %v775 = vpop.permute.xlu0 %774
        %v777 = vsel %vm384, %v773, 0
        %v780 = vsel %vm448, %v775, 0
        %782 = vmatprep.subr.bf16.mxu0 0
        %783 = vmatpush1.bf16.msra.mxu0 %v780
        %784 = vmatprep.subr.bf16.mxu0 0
        %785 = vmatpush1.bf16.msra.mxu0 0
        %786 = vmatprep.subr.bf16.mxu0 0
        %787 = vmatpush1.bf16.msra.mxu0 0
        %788 = vmatprep.subr.bf16.mxu0 0
        %789 = vmatpush1.bf16.msra.mxu0 0
        %790 = vmatprep.subr.bf16.mxu0 0
        %791 = vmatpush1.bf16.msra.mxu0 0
        %792 = vmatprep.subr.bf16.mxu0 0
        %793 = vmatpush1.bf16.msra.mxu0 0
        %794 = vmatprep.subr.bf16.mxu0 0
        %795 = vmatpush1.bf16.msra.mxu0 0
        %796 = vmatprep.subr.bf16.mxu0 0
        %797 = vmatpush1.bf16.msra.mxu0 0
        %798 = vmatprep.subr.bf16.mxu0 0
        %799 = vmatpush1.bf16.msra.mxu0 0
        %800 = vmatprep.subr.bf16.mxu0 0
        %801 = vmatpush1.bf16.msra.mxu0 0
        %802 = vmatprep.subr.bf16.mxu0 0
        %803 = vmatpush1.bf16.msra.mxu0 0
        %804 = vmatprep.subr.bf16.mxu0 0
        %805 = vmatpush1.bf16.msra.mxu0 0
        %806 = vmatprep.subr.bf16.mxu0 0
        %807 = vmatpush1.bf16.msra.mxu0 0
        %808 = vmatprep.subr.bf16.mxu0 0
        %809 = vmatpush1.bf16.msra.mxu0 0
        %810 = vmatprep.subr.bf16.mxu0 0
        %811 = vmatpush1.bf16.msra.mxu0 0
        %812 = vmatprep.subr.bf16.mxu0 0
        %813 = vmatpush1.bf16.msra.mxu0 0
        %814 = vmatprep.mubr.bf16.mxu0 0
        %815 = vmatmul.mubr.bf16.gmra.mrb[0].mxu0 %v777
        %v816 = vpop.f32.mrb[0].mxu0
        %v817 = vadd.f32 0.0, %v816
        %v818 = vpop.f32.mrb[0].mxu0
        %v819 = vpop.f32.mrb[0].mxu0
        %v820 = vpop.f32.mrb[0].mxu0
        %821 = vdwg.mxu0
        %823 = vrot.lane.b32.xlu0 %v597, 8
        %v824 = vpop.permute.xlu0 %823
        %827 = vrot.lane.b32.xlu0 %v707, 16
        %v828 = vpop.permute.xlu0 %827
        %831 = vrot.lane.b32.xlu0 %v817, 24
        %v832 = vpop.permute.xlu0 %831
        %v834 = vsel %vm384, %v487, %v824
        %vm835 = vcmask 130048
        %v836 = vsel %vm835, %v834, %v828
        %vm837 = vcmask 195584
        %v838 = vsel %vm837, %v836, %v832
        %v839 = vpack.c.bf16 %v838, %v838
        %v840 = vld [vmem:[#allocation7] sm:$0xf]
        %v841 = vld [vmem:[#allocation7 + $0x4] sm:$0xf]
        %v842 = vld [vmem:[#allocation7 + $0x8] sm:$0xf]
        %v843 = vld [vmem:[#allocation7 + $0xc] sm:$0xf]
        %v848 = vunpack.c.l.b16 %v840
        %v849 = vunpack.c.l.b16 %v841
        %v850 = vunpack.c.l.b16 %v842
        %v851 = vunpack.c.l.b16 %v843
        %v852 = vpack.c.b16 %v849, %v848
        %v853 = vpack.c.b16 %v851, %v850
        %v857 = vsel %vm336, %v839, 0
        %859 = vmatprep.subr.bf16.mxu0 0
        %860 = vmatpush1.bf16.msra.mxu0 %v852
        %861 = vmatprep.subr.bf16.mxu0 0
        %862 = vmatpush1.bf16.msra.mxu0 %v853
        %863 = vmatprep.subr.bf16.mxu0 0
        %864 = vmatpush1.bf16.msra.mxu0 0
        %865 = vmatprep.subr.bf16.mxu0 0
        %866 = vmatpush1.bf16.msra.mxu0 0
        %867 = vmatprep.subr.bf16.mxu0 0
        %868 = vmatpush1.bf16.msra.mxu0 0
        %869 = vmatprep.subr.bf16.mxu0 0
        %870 = vmatpush1.bf16.msra.mxu0 0
        %871 = vmatprep.subr.bf16.mxu0 0
        %872 = vmatpush1.bf16.msra.mxu0 0
        %873 = vmatprep.subr.bf16.mxu0 0
        %874 = vmatpush1.bf16.msra.mxu0 0
        %875 = vmatprep.subr.bf16.mxu0 0
        %876 = vmatpush1.bf16.msra.mxu0 0
        %877 = vmatprep.subr.bf16.mxu0 0
        %878 = vmatpush1.bf16.msra.mxu0 0
        %879 = vmatprep.subr.bf16.mxu0 0
        %880 = vmatpush1.bf16.msra.mxu0 0
        %881 = vmatprep.subr.bf16.mxu0 0
        %882 = vmatpush1.bf16.msra.mxu0 0
        %883 = vmatprep.subr.bf16.mxu0 0
        %884 = vmatpush1.bf16.msra.mxu0 0
        %885 = vmatprep.subr.bf16.mxu0 0
        %886 = vmatpush1.bf16.msra.mxu0 0
        %887 = vmatprep.subr.bf16.mxu0 0
        %888 = vmatpush1.bf16.msra.mxu0 0
        %889 = vmatprep.subr.bf16.mxu0 0
        %890 = vmatpush1.bf16.msra.mxu0 0
        %891 = vmatprep.mubr.bf16.mxu0 0
        %892 = vmatmul.mubr.bf16.gmra.mrb[0].mxu0 %v857
        %v893 = vpop.f32.mrb[0].mxu0
        %v894 = vadd.f32 0.0, %v893
        %v895 = vpop.f32.mrb[0].mxu0
        %v896 = vpop.f32.mrb[0].mxu0
        %v897 = vpop.f32.mrb[0].mxu0
        %898 = vdwg.mxu0
        %p899 = scmp.eq.s32.totalorder %s28, 0
        // Predicated region
        $region53: #{tpu_custom_call.1} parent=39 // pred_check
          %p900 = pneg %p899
        $region54: #{tpu_custom_call.1} parent=39 // pred_check_branch
          %902 = sbr.rel (%p900) target = $region56
        $region55: #{tpu_custom_call.1} parent=39 // pred_region
          %v903 = vld [vmem:[%s4] sm:$0x1]
          %v905 = vlaneseq
          %v906 = vshrl.u32 %v905, 7
          %v907 = vsub.s32 0, %v906
          %v908 = vrot.slane %v903, %v907
          %v910 = vadd.f32 %v894, %v908
          %911 = vst.msk [vmem:[%s307] sm:$0xff] %vm336, %v910
        $region56: #{tpu_custom_call.1} parent=39 // pred_fallthru
          _
        %p912 = scmp.gt.s32.totalorder %s28, 0
        // Predicated region
        $region57: #{tpu_custom_call.1} parent=39 // pred_check
          %p913 = pneg %p912
        $region58: #{tpu_custom_call.1} parent=39 // pred_check_branch
          %915 = sbr.rel (%p913) target = $region60
        $region59: #{tpu_custom_call.1} parent=39 // pred_region
          %v916 = vld [vmem:[%s307] sm:$0xff]
          %v917 = vadd.f32 %v916, %v894
          %918 = vst.msk [vmem:[%s307] sm:$0xff] %vm336, %v917
        $region60: #{tpu_custom_call.1} parent=39 // pred_fallthru
          _
        %s919 = sand.u32 %s168, 1
        %s920 = scalar_lea.sflag [#allocation4], %s919
        %s921 = sand.u32 %s168, 1
        %s922 = smul.addr %s921, 8
        %s923 = scalar_lea.vmem [#allocation8], %s922
        // Predicated region
        $region61: #{tpu_custom_call.1} parent=39 // pred_check
          %p924 = pneg %p178
        $region62: #{tpu_custom_call.1} parent=39 // pred_check_branch
          %926 = sbr.rel (%p924) target = $region64
        $region63: #{tpu_custom_call.1} parent=39 // pred_region
          %s928 = ssub.s32 128, 128
          %929 = vsyncadd %s920, %s928
          %s930 = smul.addr %s27, 128
          %s931 = scalar_lea.hbm %s5, %s930
          %s933 = sshll.u32 %s923, 4
          %s934 = int_to_ptr.vmem [resolvable:$true] %s933
          %936 = dma.vmem_to_hbm [thread:$0]  %s934, 128, %s931, %s920
        $region64: #{tpu_custom_call.1} parent=39 // pred_fallthru
          _
      $region40: #{tpu_custom_call.1} parent=5 // pred_fallthru
        _
      %p937 = scmp.le.s32.totalorder 2, %s18
      // Predicated region
      $region65: #{tpu_custom_call.1} parent=5 // pred_check
        %p938 = pneg %p937
      $region66: #{tpu_custom_call.1} parent=5 // pred_check_branch
        %940 = sbr.rel (%p938) target = $region68
      $region67: #{tpu_custom_call.1} parent=5 // pred_region
        %s941 = ssub.s32 %s18, 2
        // Predicated region
        $region69: #{tpu_custom_call.1} parent=67 // pred_check
          %p942 = pneg %p184
        $region70: #{tpu_custom_call.1} parent=67 // pred_check_branch
          %944 = sbr.rel (%p942) target = $region72
        $region71: #{tpu_custom_call.1} parent=67 // pred_region
          %s945 = sand.u32 %s169, 1
          %s946 = scalar_lea.sflag [#allocation4], %s945
          %s947 = sand.u32 %s169, 1
          %s948 = smul.addr %s947, 8
          %s949 = scalar_lea.vmem [#allocation8], %s948
          %950 = dma.done %s946, 128
        $region72: #{tpu_custom_call.1} parent=67 // pred_fallthru
          _
      $region68: #{tpu_custom_call.1} parent=5 // pred_fallthru
        _
    $region6: #{tpu_custom_call.1} parent=1 // loop_footer
      %s22 = sadd.s32 1, %s18
    $region7: #{tpu_custom_call.1} parent=1 // loop_footer_branch
      %17 = sbr.rel target = $region3
    $region8: #{tpu_custom_call.1} parent=1 // loop_exit
      _
    %951 = vsyncpa [#allocation3], 1
    %s952 = scalar_lea.sflag [#allocation3], 1
    %953 = vsyncpa %s952, 1
    %954 = vsyncpa [#allocation6], 1
    %955 = vsyncpa [#allocation4], 1
    %s956 = scalar_lea.sflag [#allocation4], 1
    %957 = vsyncpa %s956, 1

</llo_original>
